<compile_context>
chip_gen: v7x
topology: tpu7x:2x2x1
jax: 0.10.0
libtpu: 0.0.40
codegen_flags: <defaults>
</compile_context>

<pallas_src>
import functools
import math

import jax
import jax.numpy as jnp
from jax.experimental import pallas as pl
from jax.experimental.pallas import tpu as pltpu

# Model hyper-parameters (small, consistent with the module's __init__).
Embedding_size = 32
FF_d = 64

_LANES = 128
_MIN_SPLIT_PACKED_ROWS = 64   # below this, a 2nd grid step (~0.35us) isn't worth it


def _round_up(x, n):
    return ((x + n - 1) // n) * n


def _cdiv(a, b):
    return -(-a // b)


def _pick_row_tile(m_rows, tm_max):
    """Row tile in packed rows.  `tm_max` is a multiple of 8.

    Small problems get one full-extent tile (legal even if not 8-aligned since
    it equals the full array dim).  Larger problems use 8-aligned tiles capped
    so the grid has >= 2 steps, letting v7x's two TensorCores both get work on
    the "parallel" axis; the last block may be ragged (OOB stores are dropped).
    """
    if m_rows < _MIN_SPLIT_PACKED_ROWS and m_rows <= tm_max:
        return m_rows
    half = _round_up(_cdiv(m_rows, 2), 8)
    return max(8, min(tm_max, half))


def _ffn_kernel(x_ref, w1_ref, b1_ref, w2_ref, b2_ref, o_ref, *,
                approximate_gelu, matmul_dtype):
    # Packed path:   x:[TM,128] w1:[128,256] b1:[1,256] w2:[256,128] b2:[1,128]
    # Fallback path: x:[TM,E]   w1:[E,F]     b1:[1,F]   w2:[F,E]     b2:[1,E]
    x = x_ref[...]
    w1 = w1_ref[...]
    w2 = w2_ref[...]
    if matmul_dtype is not None:
        x = x.astype(matmul_dtype)   # explicit, policy-driven cast

    # First linear on the MXU, f32 accumulation; bias add in f32.
    h = jnp.dot(x, w1, preferred_element_type=jnp.float32)
    h = h + b1_ref[...].astype(jnp.float32)

    if approximate_gelu:
        # tanh approximation runs on the (otherwise idle) EUP slot.
        h = jax.nn.gelu(h, approximate=True)
    else:
        # Exact-erf GELU matching the torch/HuggingFace reference numerics.
        h = h * 0.5 * (1.0 + jax.lax.erf(h * (1.0 / math.sqrt(2.0))))

    if matmul_dtype is not None:
        h = h.astype(matmul_dtype)

    out = jnp.dot(h, w2, preferred_element_type=jnp.float32)
    out = out + b2_ref[...].astype(jnp.float32)
    o_ref[...] = out.astype(o_ref.dtype)


def poswise_ffn(attn, w1, b1, w2, b2, *, tm=4096, approximate_gelu=False,
                matmul_dtype=None):
    """attn: [batch, seq, E] -> [batch, seq, E].

    tm: row-tile size in *input* rows (converted internally to packed rows).
    approximate_gelu: use tanh-approx GELU (EUP) instead of exact erf (VPU).
    matmul_dtype: optional explicit MXU operand dtype (e.g. jnp.bfloat16, useful
        on v5e); accumulation stays f32.  None -> compute in the input dtype.
    """
    batch, seq, emb = attn.shape
    assert emb == w1.shape[0] and w1.shape[1] == w2.shape[0] and w2.shape[1] == emb
    ff = w1.shape[1]

    m = batch * seq
    x2d = attn.reshape(m, emb)                     # free: contiguous reshape

    # Lane-dense packing: fold `pack` consecutive rows into one 128-lane row.
    pack = _LANES // emb if (emb < _LANES and _LANES % emb == 0) else 1
    if pack > 1 and m % pack != 0:
        # TODO(synk): mask a ragged M%pack tail in-kernel instead of unpacking.
        pack = 1

    if pack > 1:
        x2d = x2d.reshape(m // pack, emb * pack)   # free: contiguous reshape
        w1p = jnp.kron(jnp.eye(pack, dtype=w1.dtype), w1)   # [E*p, F*p] block-diag
        w2p = jnp.kron(jnp.eye(pack, dtype=w2.dtype), w2)   # [F*p, E*p] block-diag
        b1p = jnp.tile(b1.reshape(1, ff), (1, pack))
        b2p = jnp.tile(b2.reshape(1, emb), (1, pack))
    else:
        w1p, w2p = w1, w2
        b1p, b2p = b1.reshape(1, ff), b2.reshape(1, emb)

    if matmul_dtype is not None:
        w1p = w1p.astype(matmul_dtype)
        w2p = w2p.astype(matmul_dtype)

    m_rows, row_w = x2d.shape                      # packed rows, lane width

    tm_max = max(8, _round_up(max(tm // pack, 8), 8))
    tm_eff = _pick_row_tile(m_rows, tm_max)
    grid = (_cdiv(m_rows, tm_eff),)                # ragged last block OK: OOB
                                                   # stores dropped, rows indep.

    kernel = functools.partial(_ffn_kernel,
                               approximate_gelu=approximate_gelu,
                               matmul_dtype=matmul_dtype)

    out2d = pl.pallas_call(
        kernel,
        out_shape=jax.ShapeDtypeStruct((m_rows, row_w), attn.dtype),
        grid_spec=pltpu.PrefetchScalarGridSpec(
            num_scalar_prefetch=0,
            grid=grid,
            in_specs=[
                pl.BlockSpec((tm_eff, row_w), lambda i: (i, 0)),  # x (pipelined)
                pl.BlockSpec(w1p.shape, lambda i: (0, 0)),        # W1' (VMEM-resident)
                pl.BlockSpec(b1p.shape, lambda i: (0, 0)),        # b1'
                pl.BlockSpec(w2p.shape, lambda i: (0, 0)),        # W2'
                pl.BlockSpec(b2p.shape, lambda i: (0, 0)),        # b2'
            ],
            out_specs=pl.BlockSpec((tm_eff, row_w), lambda i: (i, 0)),
        ),
        compiler_params=pltpu.CompilerParams(
            # Row tiles are independent -> shard across TensorCores (v7x megacore).
            dimension_semantics=("parallel",)),
    )(x2d, w1p, b1p, w2p, b2p)

    return out2d.reshape(batch, seq, emb)          # free: contiguous reshapes


def init_params(key):
    """Deterministic init mimicking nn.Linear default (uniform +/- 1/sqrt(fan_in))."""
    k1, k2, k3, k4 = jax.random.split(key, 4)
    lim1 = 1.0 / math.sqrt(Embedding_size)
    lim2 = 1.0 / math.sqrt(FF_d)
    # Stored as [in, out] (transpose of PyTorch's [out, in]).
    w1 = jax.random.uniform(k1, (Embedding_size, FF_d), jnp.float32, -lim1, lim1)
    b1 = jax.random.uniform(k2, (1, FF_d), jnp.float32, -lim1, lim1)
    w2 = jax.random.uniform(k3, (FF_d, Embedding_size), jnp.float32, -lim2, lim2)
    b2 = jax.random.uniform(k4, (1, Embedding_size), jnp.float32, -lim2, lim2)
    return w1, b1, w2, b2


def _reference(attn, w1, b1, w2, b2):
    h = attn @ w1 + b1
    h = h * 0.5 * (1.0 + jax.lax.erf(h / math.sqrt(2.0)))
    return h @ w2 + b2


if __name__ == "__main__":
    key = jax.random.PRNGKey(0)
    k1, k2, k3, kp = jax.random.split(key, 4)
    w1, b1, w2, b2 = init_params(kp)

    # 1) Small module-spec shape: M=16 -> 4 packed rows, single-tile grid.
    attn = jax.random.normal(k1, (2, 8, Embedding_size), jnp.float32)
    out = jax.block_until_ready(poswise_ffn(attn, w1, b1, w2, b2))
    ref = _reference(attn, w1, b1, w2, b2)
    assert jnp.allclose(out, ref, atol=1e-5, rtol=1e-5), "mismatch (small)"

    # 2) M=400 -> 100 packed rows, 2 grid steps with a ragged last block
    #    (no wrapper-side pad/slice; OOB stores dropped in-kernel).
    attn2 = jax.random.normal(k2, (4, 100, Embedding_size), jnp.float32)
    out2 = jax.block_until_ready(poswise_ffn(attn2, w1, b1, w2, b2))
    ref2 = _reference(attn2, w1, b1, w2, b2)
    assert jnp.allclose(out2, ref2, atol=1e-5, rtol=1e-5), "mismatch (tiled/ragged)"

    # 3) Same data, small tile override -> 4 grid steps, multi-step pipeline path.
    out3 = jax.block_until_ready(poswise_ffn(attn2, w1, b1, w2, b2, tm=128))
    assert jnp.allclose(out3, ref2, atol=1e-5, rtol=1e-5), "mismatch (small-tile)"

    # 4) M=7 not divisible by the pack factor -> unpacked fallback path.
    attn3 = jax.random.normal(k3, (1, 7, Embedding_size), jnp.float32)
    out4 = jax.block_until_ready(poswise_ffn(attn3, w1, b1, w2, b2))
    ref4 = _reference(attn3, w1, b1, w2, b2)
    assert jnp.allclose(out4, ref4, atol=1e-5, rtol=1e-5), "mismatch (fallback)"

    print("KERNEL_OK")
</pallas_src>

<mosaic_0001>
module attributes {stable_mosaic.version = 11 : i64} {
  func.func @_ffn_kernel(%arg0: i32, %arg1: memref<4x128xf32, #tpu.memory_space<vmem>>, %arg2: memref<128x256xf32, #tpu.memory_space<vmem>>, %arg3: memref<1x256xf32, #tpu.memory_space<vmem>>, %arg4: memref<256x128xf32, #tpu.memory_space<vmem>>, %arg5: memref<1x128xf32, #tpu.memory_space<vmem>>, %arg6: memref<4x128xf32, #tpu.memory_space<vmem>>) attributes {dimension_semantics = [#tpu.dimension_semantics<parallel>], iteration_bounds = array<i64: 1>, scalar_prefetch = 0 : i64, scratch_operands = 0 : i64, tpu.core_type = #tpu.core_type<tc>, window_params = [{transform_indices = @transform_0, window_bounds = array<i64: 4, 128>}, {pipeline_mode = #tpu.pipeline_mode<synchronous>, transform_indices = @transform_1, window_bounds = array<i64: 128, 256>}, {pipeline_mode = #tpu.pipeline_mode<synchronous>, transform_indices = @transform_2, window_bounds = array<i64: 1, 256>}, {pipeline_mode = #tpu.pipeline_mode<synchronous>, transform_indices = @transform_3, window_bounds = array<i64: 256, 128>}, {pipeline_mode = #tpu.pipeline_mode<synchronous>, transform_indices = @transform_4, window_bounds = array<i64: 1, 128>}, {transform_indices = @transform_5, window_bounds = array<i64: 4, 128>}]} {
    %c0 = arith.constant 0 : index
    %c0_0 = arith.constant 0 : index
    %0 = vector.load %arg1[%c0, %c0_0] : memref<4x128xf32, #tpu.memory_space<vmem>>, vector<4x128xf32>
    %c0_1 = arith.constant 0 : index
    %c0_2 = arith.constant 0 : index
    %1 = vector.load %arg2[%c0_1, %c0_2] : memref<128x256xf32, #tpu.memory_space<vmem>>, vector<128x256xf32>
    %c0_3 = arith.constant 0 : index
    %c0_4 = arith.constant 0 : index
    %2 = vector.load %arg4[%c0_3, %c0_4] : memref<256x128xf32, #tpu.memory_space<vmem>>, vector<256x128xf32>
    %cst = arith.constant dense<0.000000e+00> : vector<4x256xf32>
    %3 = tpu.matmul %0, %1, %cst {dimension_numbers = #tpu.dot_dimension_numbers<[1], [0], [0], [1], [0, 0, 1, 1], [], []>} : vector<4x128xf32>, vector<128x256xf32>, vector<4x256xf32> -> vector<4x256xf32>
    %c0_5 = arith.constant 0 : index
    %c0_6 = arith.constant 0 : index
    %4 = vector.load %arg3[%c0_5, %c0_6] : memref<1x256xf32, #tpu.memory_space<vmem>>, vector<1x256xf32>
    %5 = vector.broadcast %4 : vector<1x256xf32> to vector<4x256xf32>
    %6 = arith.addf %3, %5 : vector<4x256xf32>
    %cst_7 = arith.constant 5.000000e-01 : f32
    %7 = vector.broadcast %cst_7 : f32 to vector<4x256xf32>
    %8 = arith.mulf %6, %7 : vector<4x256xf32>
    %cst_8 = arith.constant 0.707106769 : f32
    %9 = vector.broadcast %cst_8 : f32 to vector<4x256xf32>
    %10 = arith.mulf %6, %9 : vector<4x256xf32>
    %11 = math.erf %10 : vector<4x256xf32>
    %cst_9 = arith.constant 1.000000e+00 : f32
    %12 = vector.broadcast %cst_9 : f32 to vector<4x256xf32>
    %13 = arith.addf %12, %11 : vector<4x256xf32>
    %14 = arith.mulf %8, %13 : vector<4x256xf32>
    %cst_10 = arith.constant dense<0.000000e+00> : vector<4x128xf32>
    %15 = tpu.matmul %14, %2, %cst_10 {dimension_numbers = #tpu.dot_dimension_numbers<[1], [0], [0], [1], [0, 0, 1, 1], [], []>} : vector<4x256xf32>, vector<256x128xf32>, vector<4x128xf32> -> vector<4x128xf32>
    %c0_11 = arith.constant 0 : index
    %c0_12 = arith.constant 0 : index
    %16 = vector.load %arg5[%c0_11, %c0_12] : memref<1x128xf32, #tpu.memory_space<vmem>>, vector<1x128xf32>
    %17 = vector.broadcast %16 : vector<1x128xf32> to vector<4x128xf32>
    %18 = arith.addf %15, %17 : vector<4x128xf32>
    %c0_13 = arith.constant 0 : index
    %c0_14 = arith.constant 0 : index
    %19 = vector.load %arg6[%c0_13, %c0_14] : memref<4x128xf32, #tpu.memory_space<vmem>>, vector<4x128xf32>
    tpu.vector_store %arg6[%c0_13, %c0_14], %18 {strides = array<i32>} : memref<4x128xf32, #tpu.memory_space<vmem>>, vector<4x128xf32>,
    return
  }
  func.func @transform_0(%arg0: i32) -> (i32, i32) {
    %c0_i32 = arith.constant 0 : i32
    %c0_i32_0 = arith.constant 0 : i32
    return %arg0, %c0_i32 : i32, i32
  }
  func.func @transform_1(%arg0: i32) -> (i32, i32) {
    %c0_i32 = arith.constant 0 : i32
    %c0_i32_0 = arith.constant 0 : i32
    %c0_i32_1 = arith.constant 0 : i32
    return %c0_i32, %c0_i32_0 : i32, i32
  }
  func.func @transform_2(%arg0: i32) -> (i32, i32) {
    %c0_i32 = arith.constant 0 : i32
    %c0_i32_0 = arith.constant 0 : i32
    %c0_i32_1 = arith.constant 0 : i32
    return %c0_i32, %c0_i32_0 : i32, i32
  }
  func.func @transform_3(%arg0: i32) -> (i32, i32) {
    %c0_i32 = arith.constant 0 : i32
    %c0_i32_0 = arith.constant 0 : i32
    %c0_i32_1 = arith.constant 0 : i32
    return %c0_i32, %c0_i32_0 : i32, i32
  }
  func.func @transform_4(%arg0: i32) -> (i32, i32) {
    %c0_i32 = arith.constant 0 : i32
    %c0_i32_0 = arith.constant 0 : i32
    %c0_i32_1 = arith.constant 0 : i32
    return %c0_i32, %c0_i32_0 : i32, i32
  }
  func.func @transform_5(%arg0: i32) -> (i32, i32) {
    %c0_i32 = arith.constant 0 : i32
    %c0_i32_0 = arith.constant 0 : i32
    return %arg0, %c0_i32 : i32, i32
  }
}

</mosaic_0001>

<llo_original>
// kernel: tpu_custom_call.1
$region0: #{tpu_custom_call.1}
  #allocation0 [shape = 'u32[]', space=smem, size = 0x4, offset = 0x4, fixed_abs, tag = 'smem constant byte address 0x4 - core index']
  #allocation1 [shape = 'u32[144,128]{1,0:T(1,128)}', space=vmem, size = 0x12000, scoped, tag = 'internal scratch']
  %s0 = inlined_call_operand.hbm [shape: f32[4,128], index: 0, kind: input, shape index: {}]
  %s1 = inlined_call_operand.hbm [shape: f32[128,256], index: 1, kind: input, shape index: {}]
  %s2 = inlined_call_operand.vmem [shape: f32[1,256], index: 2, kind: input, shape index: {}]
  %s3 = inlined_call_operand.hbm [shape: f32[256,128], index: 3, kind: input, shape index: {}]
  %s4 = inlined_call_operand.vmem [shape: f32[1,128], index: 4, kind: input, shape index: {}]
  %s5 = inlined_call_operand.hbm [shape: f32[4,128], index: 5, kind: output, shape index: {}]
  %s6 = sld [smem:[#allocation0]]
  $region42: #{tpu_custom_call.1} parent=0
    _
  %s8 = ssub.s32 1, %s6
  %s9 = scalar_select 0, %s8, %s6
  $region1: #{tpu_custom_call.1} parent=0
    #allocation2 [shape = 'u8[2048]{0}', space=vmem, size = 0x800, scoped, tag = 'input window, operand 0, single buffered']
    #allocation3 [shape = 's32[1]{0}', space=sflag, size = 0x4, scoped, tag = 'scoped memory for tpu_custom_call.1']
    #allocation4 [shape = 's32[1]{0}', space=sflag, size = 0x4, scoped, tag = 'scoped memory for tpu_custom_call.1']
    #allocation5 [shape = 'u8[131072]{0}', space=vmem, size = 0x20000, scoped, tag = 'input window, operand 1, single buffered']
    #allocation6 [shape = 's32[1]{0}', space=sflag, size = 0x4, scoped, tag = 'scoped memory for tpu_custom_call.1']
    #allocation7 [shape = 'u8[131072]{0}', space=vmem, size = 0x20000, scoped, tag = 'input window, operand 3, single buffered']
    #allocation8 [shape = 'u8[2048]{0}', space=vmem, size = 0x800, scoped, tag = 'output window, operand 0, single buffered']
    %10 = vsyncpa [#allocation3], 0
    %11 = vsyncpa [#allocation6], 0
    %12 = vsyncpa [#allocation4], 0
    // Predicated region
    $region2: #{tpu_custom_call.1} parent=1 // pred_check
      _
    $region3: #{tpu_custom_call.1} parent=1 // pred_check_branch
      %14 = sbr.rel (0) target = $region5
    $region4: #{tpu_custom_call.1} parent=1 // pred_region
      %s16 = ssub.s32 64, 64
      %17 = vsyncadd [#allocation3], %s16
      %s19 = sshll.u32 [#allocation2], 4
      %s20 = int_to_ptr.vmem [resolvable:$true] %s19
      %22 = dma.hbm_to_vmem [thread:$0]  %s0, 64, %s20, [#allocation3]
    $region5: #{tpu_custom_call.1} parent=1 // pred_fallthru
      _
    // Predicated region
    $region6: #{tpu_custom_call.1} parent=1 // pred_check
      _
    $region7: #{tpu_custom_call.1} parent=1 // pred_check_branch
      %24 = sbr.rel (0) target = $region9
    $region8: #{tpu_custom_call.1} parent=1 // pred_region
      %s26 = ssub.s32 4096, 4096
      %27 = vsyncadd [#allocation6], %s26
      %s28 = sshll.u32 [#allocation5], 4
      %s29 = int_to_ptr.vmem [resolvable:$true] %s28
      %34 = dma.hbm_to_vmem [thread:$0]  %s1, 4096, %s29, [#allocation6], 256, 256, 16
    $region9: #{tpu_custom_call.1} parent=1 // pred_fallthru
      _
    // Predicated region
    $region10: #{tpu_custom_call.1} parent=1 // pred_check
      _
    $region11: #{tpu_custom_call.1} parent=1 // pred_check_branch
      %36 = sbr.rel (0) target = $region13
    $region12: #{tpu_custom_call.1} parent=1 // pred_region
      _
    $region13: #{tpu_custom_call.1} parent=1 // pred_fallthru
      _
    // Predicated region
    $region14: #{tpu_custom_call.1} parent=1 // pred_check
      _
    $region15: #{tpu_custom_call.1} parent=1 // pred_check_branch
      %38 = sbr.rel (0) target = $region17
    $region16: #{tpu_custom_call.1} parent=1 // pred_region
      %s40 = ssub.s32 4096, 4096
      %41 = vsyncadd [#allocation6], %s40
      %s42 = sshll.u32 [#allocation7], 4
      %s43 = int_to_ptr.vmem [resolvable:$true] %s42
      %48 = dma.hbm_to_vmem [thread:$0]  %s3, 4096, %s43, [#allocation6], 128, 128, 8
    $region17: #{tpu_custom_call.1} parent=1 // pred_fallthru
      _
    // Predicated region
    $region18: #{tpu_custom_call.1} parent=1 // pred_check
      _
    $region19: #{tpu_custom_call.1} parent=1 // pred_check_branch
      %50 = sbr.rel (0) target = $region21
    $region20: #{tpu_custom_call.1} parent=1 // pred_region
      _
    $region21: #{tpu_custom_call.1} parent=1 // pred_fallthru
      _
    // Predicated region
    $region22: #{tpu_custom_call.1} parent=1 // pred_check
      _
    $region23: #{tpu_custom_call.1} parent=1 // pred_check_branch
      %52 = sbr.rel (0) target = $region25
    $region24: #{tpu_custom_call.1} parent=1 // pred_region
      %53 = dma.done [#allocation3], 64
    $region25: #{tpu_custom_call.1} parent=1 // pred_fallthru
      _
    // Predicated region
    $region26: #{tpu_custom_call.1} parent=1 // pred_check
      _
    $region27: #{tpu_custom_call.1} parent=1 // pred_check_branch
      %55 = sbr.rel (0) target = $region29
    $region28: #{tpu_custom_call.1} parent=1 // pred_region
      %56 = dma.done [#allocation6], 4096
    $region29: #{tpu_custom_call.1} parent=1 // pred_fallthru
      _
    // Predicated region
    $region30: #{tpu_custom_call.1} parent=1 // pred_check
      _
    $region31: #{tpu_custom_call.1} parent=1 // pred_check_branch
      %58 = sbr.rel (0) target = $region33
    $region32: #{tpu_custom_call.1} parent=1 // pred_region
      %59 = dma.done [#allocation6], 4096
    $region33: #{tpu_custom_call.1} parent=1 // pred_fallthru
      _
    %v60 = vld [vmem:[#allocation2] sm:$0xf]
    %v61 = vld [vmem:[#allocation5] sm:$0xff]
    %v62 = vld [vmem:[#allocation5 + $0x8] sm:$0xff]
    %v63 = vld [vmem:[#allocation5 + $0x10] sm:$0xff]
    %v64 = vld [vmem:[#allocation5 + $0x18] sm:$0xff]
    %v65 = vld [vmem:[#allocation5 + $0x20] sm:$0xff]
    %v66 = vld [vmem:[#allocation5 + $0x28] sm:$0xff]
    %v67 = vld [vmem:[#allocation5 + $0x30] sm:$0xff]
    %v68 = vld [vmem:[#allocation5 + $0x38] sm:$0xff]
    %v69 = vld [vmem:[#allocation5 + $0x40] sm:$0xff]
    %v70 = vld [vmem:[#allocation5 + $0x48] sm:$0xff]
    %v71 = vld [vmem:[#allocation5 + $0x50] sm:$0xff]
    %v72 = vld [vmem:[#allocation5 + $0x58] sm:$0xff]
    %v73 = vld [vmem:[#allocation5 + $0x60] sm:$0xff]
    %v74 = vld [vmem:[#allocation5 + $0x68] sm:$0xff]
    %v75 = vld [vmem:[#allocation5 + $0x70] sm:$0xff]
    %v76 = vld [vmem:[#allocation5 + $0x78] sm:$0xff]
    %v77 = vld [vmem:[#allocation5 + $0x80] sm:$0xff]
    %v78 = vld [vmem:[#allocation5 + $0x88] sm:$0xff]
    %v79 = vld [vmem:[#allocation5 + $0x90] sm:$0xff]
    %v80 = vld [vmem:[#allocation5 + $0x98] sm:$0xff]
    %v81 = vld [vmem:[#allocation5 + $0xa0] sm:$0xff]
    %v82 = vld [vmem:[#allocation5 + $0xa8] sm:$0xff]
    %v83 = vld [vmem:[#allocation5 + $0xb0] sm:$0xff]
    %v84 = vld [vmem:[#allocation5 + $0xb8] sm:$0xff]
    %v85 = vld [vmem:[#allocation5 + $0xc0] sm:$0xff]
    %v86 = vld [vmem:[#allocation5 + $0xc8] sm:$0xff]
    %v87 = vld [vmem:[#allocation5 + $0xd0] sm:$0xff]
    %v88 = vld [vmem:[#allocation5 + $0xd8] sm:$0xff]
    %v89 = vld [vmem:[#allocation5 + $0xe0] sm:$0xff]
    %v90 = vld [vmem:[#allocation5 + $0xe8] sm:$0xff]
    %v91 = vld [vmem:[#allocation5 + $0xf0] sm:$0xff]
    %v92 = vld [vmem:[#allocation5 + $0xf8] sm:$0xff]
    %v93 = vld [vmem:[#allocation7] sm:$0xff]
    %v94 = vld [vmem:[#allocation7 + $0x8] sm:$0xff]
    %v95 = vld [vmem:[#allocation7 + $0x10] sm:$0xff]
    %v96 = vld [vmem:[#allocation7 + $0x18] sm:$0xff]
    %v97 = vld [vmem:[#allocation7 + $0x20] sm:$0xff]
    %v98 = vld [vmem:[#allocation7 + $0x28] sm:$0xff]
    %v99 = vld [vmem:[#allocation7 + $0x30] sm:$0xff]
    %v100 = vld [vmem:[#allocation7 + $0x38] sm:$0xff]
    %v101 = vld [vmem:[#allocation7 + $0x40] sm:$0xff]
    %v102 = vld [vmem:[#allocation7 + $0x48] sm:$0xff]
    %v103 = vld [vmem:[#allocation7 + $0x50] sm:$0xff]
    %v104 = vld [vmem:[#allocation7 + $0x58] sm:$0xff]
    %v105 = vld [vmem:[#allocation7 + $0x60] sm:$0xff]
    %v106 = vld [vmem:[#allocation7 + $0x68] sm:$0xff]
    %v107 = vld [vmem:[#allocation7 + $0x70] sm:$0xff]
    %v108 = vld [vmem:[#allocation7 + $0x78] sm:$0xff]
    %v109 = vld [vmem:[#allocation7 + $0x80] sm:$0xff]
    %v110 = vld [vmem:[#allocation7 + $0x88] sm:$0xff]
    %v111 = vld [vmem:[#allocation7 + $0x90] sm:$0xff]
    %v112 = vld [vmem:[#allocation7 + $0x98] sm:$0xff]
    %v113 = vld [vmem:[#allocation7 + $0xa0] sm:$0xff]
    %v114 = vld [vmem:[#allocation7 + $0xa8] sm:$0xff]
    %v115 = vld [vmem:[#allocation7 + $0xb0] sm:$0xff]
    %v116 = vld [vmem:[#allocation7 + $0xb8] sm:$0xff]
    %v117 = vld [vmem:[#allocation7 + $0xc0] sm:$0xff]
    %v118 = vld [vmem:[#allocation7 + $0xc8] sm:$0xff]
    %v119 = vld [vmem:[#allocation7 + $0xd0] sm:$0xff]
    %v120 = vld [vmem:[#allocation7 + $0xd8] sm:$0xff]
    %v121 = vld [vmem:[#allocation7 + $0xe0] sm:$0xff]
    %v122 = vld [vmem:[#allocation7 + $0xe8] sm:$0xff]
    %v123 = vld [vmem:[#allocation7 + $0xf0] sm:$0xff]
    %v124 = vld [vmem:[#allocation7 + $0xf8] sm:$0xff]
    %v125 = vld [vmem:[%s2] sm:$0x3]
    %v127 = vlaneseq
    %v128 = vshrl.u32 %v127, 7
    %v129 = vsub.s32 0, %v128
    %v130 = vrot.slane %v125, %v129
    %v131 = vlaneseq
    %v132 = vshrl.u32 %v131, 7
    %v133 = vsub.s32 1, %v132
    %v134 = vrot.slane %v125, %v133
    %137 = vmatprep.subr.mxu0 %v62
    %138 = vmatpush1.msra.mxu0 %v61
    %139 = vmatprep.subr.mxu0 %v64
    %140 = vmatpush1.msra.mxu0 %v63
    %141 = vmatprep.subr.mxu0 %v66
    %142 = vmatpush1.msra.mxu0 %v65
    %143 = vmatprep.subr.mxu0 %v68
    %144 = vmatpush1.msra.mxu0 %v67
    %145 = vmatprep.subr.mxu0 %v70
    %146 = vmatpush1.msra.mxu0 %v69
    %147 = vmatprep.subr.mxu0 %v72
    %148 = vmatpush1.msra.mxu0 %v71
    %149 = vmatprep.subr.mxu0 %v74
    %150 = vmatpush1.msra.mxu0 %v73
    %151 = vmatprep.subr.mxu0 %v76
    %152 = vmatpush1.msra.mxu0 %v75
    %153 = vmatprep.subr.mxu0 %v78
    %154 = vmatpush1.msra.mxu0 %v77
    %155 = vmatprep.subr.mxu0 %v80
    %156 = vmatpush1.msra.mxu0 %v79
    %157 = vmatprep.subr.mxu0 %v82
    %158 = vmatpush1.msra.mxu0 %v81
    %159 = vmatprep.subr.mxu0 %v84
    %160 = vmatpush1.msra.mxu0 %v83
    %161 = vmatprep.subr.mxu0 %v86
    %162 = vmatpush1.msra.mxu0 %v85
    %163 = vmatprep.subr.mxu0 %v88
    %164 = vmatpush1.msra.mxu0 %v87
    %165 = vmatprep.subr.mxu0 %v90
    %166 = vmatpush1.msra.mxu0 %v89
    %167 = vmatprep.subr.mxu0 %v92
    %168 = vmatpush1.msra.mxu0 %v91
    %169 = vmatprep.subr.mxu0 0.0
    %170 = vmatpush1.msra.mxu0 0.0
    %171 = vmatprep.subr.mxu0 0.0
    %172 = vmatpush1.msra.mxu0 0.0
    %173 = vmatprep.subr.mxu0 0.0
    %174 = vmatpush1.msra.mxu0 0.0
    %175 = vmatprep.subr.mxu0 0.0
    %176 = vmatpush1.msra.mxu0 0.0
    %177 = vmatprep.subr.mxu0 0.0
    %178 = vmatpush1.msra.mxu0 0.0
    %179 = vmatprep.subr.mxu0 0.0
    %180 = vmatpush1.msra.mxu0 0.0
    %181 = vmatprep.subr.mxu0 0.0
    %182 = vmatpush1.msra.mxu0 0.0
    %183 = vmatprep.subr.mxu0 0.0
    %184 = vmatpush1.msra.mxu0 0.0
    %185 = vmatprep.subr.mxu0 0.0
    %186 = vmatpush1.msra.mxu0 0.0
    %187 = vmatprep.subr.mxu0 0.0
    %188 = vmatpush1.msra.mxu0 0.0
    %189 = vmatprep.subr.mxu0 0.0
    %190 = vmatpush1.msra.mxu0 0.0
    %191 = vmatprep.subr.mxu0 0.0
    %192 = vmatpush1.msra.mxu0 0.0
    %193 = vmatprep.subr.mxu0 0.0
    %194 = vmatpush1.msra.mxu0 0.0
    %195 = vmatprep.subr.mxu0 0.0
    %196 = vmatpush1.msra.mxu0 0.0
    %197 = vmatprep.subr.mxu0 0.0
    %198 = vmatpush1.msra.mxu0 0.0
    %199 = vmatprep.subr.mxu0 0.0
    %200 = vmatpush1.msra.mxu0 0.0
    %201 = vmatprep.mubr.f32.mxu0 0.0
    %202 = vmatmul.mubr.f32.gmra.mrb[0].mxu0 %v60
    %v203 = vpop.f32.mrb[0].mxu0
    %v204 = vadd.f32 %v130, %v203
    %v205 = vpop.f32.mrb[0].mxu0
    %v206 = vadd.f32 %v134, %v205
    %207 = vdwg.mxu0
    %v208 = vmul.f32 %v204, 0.5
    %v209 = vmul.f32 %v206, 0.5
    %v210 = vmul.f32 %v204, 0.70710677
    %v211 = vmul.f32 %v206, 0.70710677
    %v212 = verf.f32.pop %v210
    %v213 = verf.f32.pop %v211
    %v214 = vadd.f32 %v212, 1.0
    %v215 = vadd.f32 %v213, 1.0
    %v216 = vmul.f32 %v208, %v214
    %v217 = vmul.f32 %v209, %v215
    %v218 = vld [vmem:[%s4] sm:$0x1]
    %v220 = vlaneseq
    %v221 = vshrl.u32 %v220, 7
    %v222 = vsub.s32 0, %v221
    %v223 = vrot.slane %v218, %v222
    %225 = vmatprep.subr.mxu0 0.0
    %226 = vmatpush1.msra.mxu0 %v93
    %227 = vmatprep.subr.mxu0 0.0
    %228 = vmatpush1.msra.mxu0 %v94
    %229 = vmatprep.subr.mxu0 0.0
    %230 = vmatpush1.msra.mxu0 %v95
    %231 = vmatprep.subr.mxu0 0.0
    %232 = vmatpush1.msra.mxu0 %v96
    %233 = vmatprep.subr.mxu0 0.0
    %234 = vmatpush1.msra.mxu0 %v97
    %235 = vmatprep.subr.mxu0 0.0
    %236 = vmatpush1.msra.mxu0 %v98
    %237 = vmatprep.subr.mxu0 0.0
    %238 = vmatpush1.msra.mxu0 %v99
    %239 = vmatprep.subr.mxu0 0.0
    %240 = vmatpush1.msra.mxu0 %v100
    %241 = vmatprep.subr.mxu0 0.0
    %242 = vmatpush1.msra.mxu0 %v101
    %243 = vmatprep.subr.mxu0 0.0
    %244 = vmatpush1.msra.mxu0 %v102
    %245 = vmatprep.subr.mxu0 0.0
    %246 = vmatpush1.msra.mxu0 %v103
    %247 = vmatprep.subr.mxu0 0.0
    %248 = vmatpush1.msra.mxu0 %v104
    %249 = vmatprep.subr.mxu0 0.0
    %250 = vmatpush1.msra.mxu0 %v105
    %251 = vmatprep.subr.mxu0 0.0
    %252 = vmatpush1.msra.mxu0 %v106
    %253 = vmatprep.subr.mxu0 0.0
    %254 = vmatpush1.msra.mxu0 %v107
    %255 = vmatprep.subr.mxu0 0.0
    %256 = vmatpush1.msra.mxu0 %v108
    %257 = vmatprep.subr.mxu0 0.0
    %258 = vmatpush1.msra.mxu0 %v109
    %259 = vmatprep.subr.mxu0 0.0
    %260 = vmatpush1.msra.mxu0 %v110
    %261 = vmatprep.subr.mxu0 0.0
    %262 = vmatpush1.msra.mxu0 %v111
    %263 = vmatprep.subr.mxu0 0.0
    %264 = vmatpush1.msra.mxu0 %v112
    %265 = vmatprep.subr.mxu0 0.0
    %266 = vmatpush1.msra.mxu0 %v113
    %267 = vmatprep.subr.mxu0 0.0
    %268 = vmatpush1.msra.mxu0 %v114
    %269 = vmatprep.subr.mxu0 0.0
    %270 = vmatpush1.msra.mxu0 %v115
    %271 = vmatprep.subr.mxu0 0.0
    %272 = vmatpush1.msra.mxu0 %v116
    %273 = vmatprep.subr.mxu0 0.0
    %274 = vmatpush1.msra.mxu0 %v117
    %275 = vmatprep.subr.mxu0 0.0
    %276 = vmatpush1.msra.mxu0 %v118
    %277 = vmatprep.subr.mxu0 0.0
    %278 = vmatpush1.msra.mxu0 %v119
    %279 = vmatprep.subr.mxu0 0.0
    %280 = vmatpush1.msra.mxu0 %v120
    %281 = vmatprep.subr.mxu0 0.0
    %282 = vmatpush1.msra.mxu0 %v121
    %283 = vmatprep.subr.mxu0 0.0
    %284 = vmatpush1.msra.mxu0 %v122
    %285 = vmatprep.subr.mxu0 0.0
    %286 = vmatpush1.msra.mxu0 %v123
    %287 = vmatprep.subr.mxu0 0.0
    %288 = vmatpush1.msra.mxu0 %v124
    %289 = vmatprep.mubr.f32.mxu0 %v217
    %290 = vmatmul.mubr.f32.gmra.mrb[0].mxu0 %v216
    %v291 = vpop.f32.mrb[0].mxu0
    %v292 = vadd.f32 %v223, %v291
    %v293 = vpop.f32.mrb[0].mxu0
    %294 = vdwg.mxu0
    %295 = vst [vmem:[#allocation8] sm:$0xf] %v292
    // Predicated region
    $region34: #{tpu_custom_call.1} parent=1 // pred_check
      _
    $region35: #{tpu_custom_call.1} parent=1 // pred_check_branch
      %297 = sbr.rel (0) target = $region37
    $region36: #{tpu_custom_call.1} parent=1 // pred_region
      %s299 = ssub.s32 64, 64
      %300 = vsyncadd [#allocation4], %s299
      %s302 = sshll.u32 [#allocation8], 4
      %s303 = int_to_ptr.vmem [resolvable:$true] %s302
      %305 = dma.vmem_to_hbm [thread:$0]  %s303, 64, %s5, [#allocation4]
    $region37: #{tpu_custom_call.1} parent=1 // pred_fallthru
      _
    // Predicated region
    $region38: #{tpu_custom_call.1} parent=1 // pred_check
      _
    $region39: #{tpu_custom_call.1} parent=1 // pred_check_branch
      %307 = sbr.rel (0) target = $region41
    $region40: #{tpu_custom_call.1} parent=1 // pred_region
      %308 = dma.done [#allocation4], 64
    $region41: #{tpu_custom_call.1} parent=1 // pred_fallthru
      _
    %309 = vsyncpa [#allocation3], 1
    %310 = vsyncpa [#allocation6], 1
    %311 = vsyncpa [#allocation4], 1

</llo_original>
